<compile_context>
chip_gen: v7x
topology: tpu7x:2x2x1
jax: 0.10.0
libtpu: 0.0.40
codegen_flags: <defaults>
</compile_context>

<pallas_src>
import functools

import jax
import jax.numpy as jnp
from jax.experimental import pallas as pl
from jax.experimental.pallas import tpu as pltpu


def _attention_classifier_kernel(x_ref, conv_ref, head_ref, out_ref, *,
                                 c_in, feat_dim, batch_tile):
    # One grid step == `batch_tile` batch elements.
    # x_ref:   (tb, C, HW)     conv_ref: (C+1, F)
    # head_ref:(F+1, 128)      out_ref:  (tb, 128)

    # ---- backbone stand-in: 1x1 conv (channel contraction) + bias + ReLU ----
    # TODO(synk): the pretrained ResNet50 / WideResNet / EfficientNet backbone is
    # not reproduced; a 1x1-conv + ReLU + global-average-pool stand-in preserves
    # the "features -> (B, fc_in_dim)" contract of the module.
    wc = conv_ref[0:c_in, :]                             # (C, F)
    bc = conv_ref[c_in:c_in + 1, :]                      # (1, F)

    feat_rows = []
    for i in range(batch_tile):                          # static unroll (tb <= 8)
        xb = x_ref[i]                                    # (C, HW): C sublane, HW lane
        # Transposed-LHS MXU contraction over C; result (HW, F) keeps HW on the
        # sublane axis and F on the lane axis, so the GAP below is a sublane reduce.
        h = jnp.einsum('cp,cf->pf', xb, wc,
                       preferred_element_type=jnp.float32)   # (HW, F)
        h = jnp.maximum(h + bc, 0.0)                         # bias + ReLU (VPU)
        # AdaptiveAvgPool2d(1) + view(B, -1): global average pool over pixels.
        feat_rows.append(jnp.mean(h, axis=0, keepdims=True))  # (1, F)

    feat = (jnp.concatenate(feat_rows, axis=0)
            if batch_tile > 1 else feat_rows[0])         # (tb, F)

    # ---- self.drop: nn.Dropout — identity in eval mode ----
    # TODO(synk): training-mode dropout (inverted dropout via pltpu.prng_*) not implemented.

    # ---- fused heads: ONE MXU push over [w_att | w_fc | 0-pad] (F, 128) ----
    wh = head_ref[0:feat_dim, :]                         # (F, 128)
    bh = head_ref[feat_dim:feat_dim + 1, :]              # (1, 128)
    head = jnp.dot(feat, wh,
                   preferred_element_type=jnp.float32) + bh      # (tb, 128)

    # att_layer: Linear(F,1) + Sigmoid. exp and reciprocal both use the EUP slot.
    z = head[:, 0:1]                                     # (tb, 1)
    att = pl.reciprocal(1.0 + jnp.exp(-z), approx=False)

    # Lane-dense output slab: col 0 = attention weight, cols 1..n = att * logits,
    # padded cols stay 0 (padded weights/bias are 0).
    lane = jax.lax.broadcasted_iota(jnp.int32, head.shape, 1)
    out_ref[...] = jnp.where(lane == 0, att, att * head)  # (tb, 128)


def attention_classifier(x_nchw, params, *, batch_tile=None):
    """Fused forward pass. x_nchw: float32 [B, C, H, W]. Returns (att, out)."""
    B, C, H, W = x_nchw.shape
    HW = H * W
    x = x_nchw.reshape(B, C, HW)          # free reshape; no host-side transpose

    wc, bc = params['w_conv'], params['b_conv']
    wa, ba = params['w_att'], params['b_att']
    wf, bf = params['w_fc'], params['b_fc']
    feat_dim = wc.shape[1]
    n_class = wf.shape[1]
    head_w = 128 * pl.cdiv(1 + n_class, 128)             # lane-dense output width

    # Batch tiling: up to 8 elements per grid step (sublane-friendly output tile).
    if batch_tile is None:
        batch_tile = 8 if B >= 8 else B
    tb = int(batch_tile)
    b_pad = tb * pl.cdiv(B, tb)
    if b_pad != B:
        x = jnp.pad(x, ((0, b_pad - B), (0, 0), (0, 0)))

    # Pack conv weight + bias into one (C+1, F) array (one DMA instead of two).
    conv_pack = jnp.concatenate([wc, bc.reshape(1, feat_dim)], axis=0)

    # Fuse the two heads into a single lane-dense (F+1, 128) slab:
    #   rows 0..F-1 = [w_att | w_fc | 0], row F = [b_att | b_fc | 0].
    w_head = jnp.zeros((feat_dim, head_w), jnp.float32)
    w_head = w_head.at[:, 0:1].set(wa)
    w_head = w_head.at[:, 1:1 + n_class].set(wf)
    b_head = jnp.zeros((1, head_w), jnp.float32)
    b_head = b_head.at[:, 0:1].set(ba.reshape(1, 1))
    b_head = b_head.at[:, 1:1 + n_class].set(bf.reshape(1, n_class))
    head_pack = jnp.concatenate([w_head, b_head], axis=0)         # (F+1, 128)

    kernel = functools.partial(_attention_classifier_kernel,
                               c_in=C, feat_dim=feat_dim, batch_tile=tb)

    slab = pl.pallas_call(
        kernel,
        out_shape=jax.ShapeDtypeStruct((b_pad, head_w), jnp.float32),
        grid_spec=pltpu.PrefetchScalarGridSpec(
            num_scalar_prefetch=0,
            grid=(b_pad // tb,),
            in_specs=[
                # per-step batch-tile of pixels; last two dims equal full (C, HW)
                pl.BlockSpec((tb, C, HW), lambda b: (b, 0, 0)),
                # weights: constant index_map -> resident across the grid
                pl.BlockSpec((C + 1, feat_dim), lambda b: (0, 0)),
                pl.BlockSpec((feat_dim + 1, head_w), lambda b: (0, 0)),
            ],
            out_specs=pl.BlockSpec((tb, head_w), lambda b: (b, 0)),
        ),
        compiler_params=pltpu.CompilerParams(
            dimension_semantics=("parallel",)),   # v7x: shard batch tiles across both TCs
    )(x, conv_pack, head_pack)

    att = slab[:B, 0:1]                    # (B, 1)
    out = slab[:B, 1:1 + n_class]          # (B, n_class) = att * fc(feat)
    return att, out


def reference_forward(x_nchw, params):
    """Pure-JAX reference for correctness checking."""
    B, C, H, W = x_nchw.shape
    x = x_nchw.reshape(B, C, H * W)
    h = jnp.maximum(
        jnp.einsum('bcp,cf->bpf', x, params['w_conv']) + params['b_conv'][None],
        0.0)
    feat = jnp.mean(h, axis=1)
    att = jax.nn.sigmoid(feat @ params['w_att'] + params['b_att'])
    out = att * (feat @ params['w_fc'] + params['b_fc'])
    return att, out


def init_params(key, c_in=4, feat_dim=32, n_class=11):
    ks = jax.random.split(key, 6)
    return {
        # stand-in backbone (1x1 conv): weight (C_in, F), bias (1, F)
        'w_conv': jax.random.normal(ks[0], (c_in, feat_dim), jnp.float32) * 0.1,
        'b_conv': jax.random.normal(ks[1], (1, feat_dim), jnp.float32) * 0.01,
        # att_layer = nn.Linear(fc_in_dim, 1)
        'w_att': jax.random.normal(ks[2], (feat_dim, 1), jnp.float32) * 0.1,
        'b_att': jax.random.normal(ks[3], (1, 1), jnp.float32) * 0.01,
        # fc = nn.Linear(fc_in_dim, n_class)
        'w_fc': jax.random.normal(ks[4], (feat_dim, n_class), jnp.float32) * 0.1,
        'b_fc': jax.random.normal(ks[5], (1, n_class), jnp.float32) * 0.01,
    }


if __name__ == "__main__":
    key = jax.random.PRNGKey(0)
    k_x, k_p = jax.random.split(key)

    B, C, H, W = 2, 4, 16, 16       # small image-like input
    FEAT_DIM, N_CLASS = 32, 11      # fc_in_dim (stand-in), n_class (module default)

    x = jax.random.normal(k_x, (B, C, H, W), jnp.float32)
    params = init_params(k_p, c_in=C, feat_dim=FEAT_DIM, n_class=N_CLASS)

    att, out = attention_classifier(x, params)
    jax.block_until_ready((att, out))

    att_ref, out_ref = reference_forward(x, params)
    assert att.shape == (B, 1) and out.shape == (B, N_CLASS)
    assert jnp.allclose(att, att_ref, atol=1e-5, rtol=1e-5)
    assert jnp.allclose(out, out_ref, atol=1e-5, rtol=1e-5)

    print("KERNEL_OK")
</pallas_src>

<mosaic_0001>
module attributes {stable_mosaic.version = 11 : i64} {
  func.func @_attention_classifier_kernel(%arg0: i32, %arg1: memref<2x4x256xf32, #tpu.memory_space<vmem>>, %arg2: memref<5x32xf32, #tpu.memory_space<vmem>>, %arg3: memref<33x128xf32, #tpu.memory_space<vmem>>, %arg4: memref<2x128xf32, #tpu.memory_space<vmem>>) attributes {dimension_semantics = [#tpu.dimension_semantics<parallel>], iteration_bounds = array<i64: 1>, scalar_prefetch = 0 : i64, scratch_operands = 0 : i64, tpu.core_type = #tpu.core_type<tc>, window_params = [{transform_indices = @transform_0, window_bounds = array<i64: 2, 4, 256>}, {pipeline_mode = #tpu.pipeline_mode<synchronous>, transform_indices = @transform_1, window_bounds = array<i64: 5, 32>}, {pipeline_mode = #tpu.pipeline_mode<synchronous>, transform_indices = @transform_2, window_bounds = array<i64: 33, 128>}, {transform_indices = @transform_3, window_bounds = array<i64: 2, 128>}]} {
    %c0 = arith.constant 0 : index
    %c0_0 = arith.constant 0 : index
    %0 = vector.load %arg2[%c0, %c0_0] : memref<5x32xf32, #tpu.memory_space<vmem>>, vector<4x32xf32>
    %c4 = arith.constant 4 : index
    %c0_1 = arith.constant 0 : index
    %1 = vector.load %arg2[%c4, %c0_1] : memref<5x32xf32, #tpu.memory_space<vmem>>, vector<1x32xf32>
    %c0_2 = arith.constant 0 : index
    %c0_3 = arith.constant 0 : index
    %c0_4 = arith.constant 0 : index
    %2 = vector.load %arg1[%c0_2, %c0_3, %c0_4] : memref<2x4x256xf32, #tpu.memory_space<vmem>>, vector<1x4x256xf32>
    %3 = vector.shape_cast %2 : vector<1x4x256xf32> to vector<4x256xf32>
    "tpu.trace_start"() <{level = 10 : i32, message = "cp,cf->pf"}> : () -> ()
    %cst = arith.constant dense<0.000000e+00> : vector<256x32xf32>
    %4 = tpu.matmul %3, %0, %cst {dimension_numbers = #tpu.dot_dimension_numbers<[0], [0], [1], [1], [0, 1, 1, 1], [], []>} : vector<4x256xf32>, vector<4x32xf32>, vector<256x32xf32> -> vector<256x32xf32>
    "tpu.trace_stop"() : () -> ()
    %5 = vector.broadcast %1 : vector<1x32xf32> to vector<256x32xf32>
    %6 = arith.addf %4, %5 : vector<256x32xf32>
    %cst_5 = arith.constant 0.000000e+00 : f32
    %7 = vector.broadcast %cst_5 : f32 to vector<256x32xf32>
    %8 = arith.maximumf %6, %7 : vector<256x32xf32>
    %cst_6 = arith.constant dense<0.000000e+00> : vector<32xf32>
    %9 = vector.multi_reduction <add>, %8, %cst_6 [0] : vector<256x32xf32> to vector<32xf32>
    %10 = vector.shape_cast %9 : vector<32xf32> to vector<1x32xf32>
    %cst_7 = arith.constant 2.560000e+02 : f32
    %11 = vector.broadcast %cst_7 : f32 to vector<1x32xf32>
    %12 = arith.divf %10, %11 : vector<1x32xf32>
    %c1 = arith.constant 1 : index
    %c0_8 = arith.constant 0 : index
    %c0_9 = arith.constant 0 : index
    %13 = vector.load %arg1[%c1, %c0_8, %c0_9] : memref<2x4x256xf32, #tpu.memory_space<vmem>>, vector<1x4x256xf32>
    %14 = vector.shape_cast %13 : vector<1x4x256xf32> to vector<4x256xf32>
    "tpu.trace_start"() <{level = 10 : i32, message = "cp,cf->pf"}> : () -> ()
    %cst_10 = arith.constant dense<0.000000e+00> : vector<256x32xf32>
    %15 = tpu.matmul %14, %0, %cst_10 {dimension_numbers = #tpu.dot_dimension_numbers<[0], [0], [1], [1], [0, 1, 1, 1], [], []>} : vector<4x256xf32>, vector<4x32xf32>, vector<256x32xf32> -> vector<256x32xf32>
    "tpu.trace_stop"() : () -> ()
    %16 = vector.broadcast %1 : vector<1x32xf32> to vector<256x32xf32>
    %17 = arith.addf %15, %16 : vector<256x32xf32>
    %cst_11 = arith.constant 0.000000e+00 : f32
    %18 = vector.broadcast %cst_11 : f32 to vector<256x32xf32>
    %19 = arith.maximumf %17, %18 : vector<256x32xf32>
    %cst_12 = arith.constant dense<0.000000e+00> : vector<32xf32>
    %20 = vector.multi_reduction <add>, %19, %cst_12 [0] : vector<256x32xf32> to vector<32xf32>
    %21 = vector.shape_cast %20 : vector<32xf32> to vector<1x32xf32>
    %cst_13 = arith.constant 2.560000e+02 : f32
    %22 = vector.broadcast %cst_13 : f32 to vector<1x32xf32>
    %23 = arith.divf %21, %22 : vector<1x32xf32>
    %24 = tpu.concatenate %12, %23 in 0 : vector<1x32xf32>, vector<1x32xf32> -> vector<2x32xf32>
    %c0_14 = arith.constant 0 : index
    %c0_15 = arith.constant 0 : index
    %25 = vector.load %arg3[%c0_14, %c0_15] : memref<33x128xf32, #tpu.memory_space<vmem>>, vector<32x128xf32>
    %c32 = arith.constant 32 : index
    %c0_16 = arith.constant 0 : index
    %26 = vector.load %arg3[%c32, %c0_16] : memref<33x128xf32, #tpu.memory_space<vmem>>, vector<1x128xf32>
    %cst_17 = arith.constant dense<0.000000e+00> : vector<2x128xf32>
    %27 = tpu.matmul %24, %25, %cst_17 {dimension_numbers = #tpu.dot_dimension_numbers<[1], [0], [0], [1], [0, 0, 1, 1], [], []>} : vector<2x32xf32>, vector<32x128xf32>, vector<2x128xf32> -> vector<2x128xf32>
    %28 = vector.broadcast %26 : vector<1x128xf32> to vector<2x128xf32>
    %29 = arith.addf %27, %28 : vector<2x128xf32>
    %30 = vector.extract_strided_slice %29 {offsets = [0, 0], sizes = [2, 1], strides = [1, 1]} : vector<2x128xf32> to vector<2x1xf32>
    %cst_18 = arith.constant 0.000000e+00 : f32
    %31 = vector.broadcast %cst_18 : f32 to vector<2x1xf32>
    %32 = arith.subf %31, %30 : vector<2x1xf32>
    %33 = math.exp %32 : vector<2x1xf32>
    %cst_19 = arith.constant 1.000000e+00 : f32
    %34 = vector.broadcast %cst_19 : f32 to vector<2x1xf32>
    %35 = arith.addf %34, %33 : vector<2x1xf32>
    %36 = tpu.reciprocal %35 : vector<2x1xf32> -> vector<2x1xf32>
    %37 = tpu.iota {dimensions = array<i32: 1>} : vector<2x128xi32>
    %c0_i32 = arith.constant 0 : i32
    %38 = vector.broadcast %c0_i32 : i32 to vector<2x128xi32>
    %39 = arith.cmpi eq, %37, %38 : vector<2x128xi32>
    %40 = vector.broadcast %36 : vector<2x1xf32> to vector<2x128xf32>
    %41 = arith.mulf %40, %29 : vector<2x128xf32>
    %42 = vector.shape_cast %36 : vector<2x1xf32> to vector<2x1xf32>
    %43 = vector.broadcast %42 : vector<2x1xf32> to vector<2x128xf32>
    %44 = arith.select %39, %43, %41 : vector<2x128xi1>, vector<2x128xf32>
    %c0_20 = arith.constant 0 : index
    %c0_21 = arith.constant 0 : index
    %45 = vector.load %arg4[%c0_20, %c0_21] : memref<2x128xf32, #tpu.memory_space<vmem>>, vector<2x128xf32>
    tpu.vector_store %arg4[%c0_20, %c0_21], %44 {strides = array<i32>} : memref<2x128xf32, #tpu.memory_space<vmem>>, vector<2x128xf32>,
    return
  }
  func.func @transform_0(%arg0: i32) -> (i32, i32, i32) {
    %c0_i32 = arith.constant 0 : i32
    %c0_i32_0 = arith.constant 0 : i32
    %c0_i32_1 = arith.constant 0 : i32
    return %arg0, %c0_i32, %c0_i32_0 : i32, i32, i32
  }
  func.func @transform_1(%arg0: i32) -> (i32, i32) {
    %c0_i32 = arith.constant 0 : i32
    %c0_i32_0 = arith.constant 0 : i32
    %c0_i32_1 = arith.constant 0 : i32
    return %c0_i32, %c0_i32_0 : i32, i32
  }
  func.func @transform_2(%arg0: i32) -> (i32, i32) {
    %c0_i32 = arith.constant 0 : i32
    %c0_i32_0 = arith.constant 0 : i32
    %c0_i32_1 = arith.constant 0 : i32
    return %c0_i32, %c0_i32_0 : i32, i32
  }
  func.func @transform_3(%arg0: i32) -> (i32, i32) {
    %c0_i32 = arith.constant 0 : i32
    %c0_i32_0 = arith.constant 0 : i32
    return %arg0, %c0_i32 : i32, i32
  }
}

</mosaic_0001>

<llo_original>
// kernel: tpu_custom_call.1
$region0: #{tpu_custom_call.1}
  #allocation0 [shape = 'u32[]', space=smem, size = 0x4, offset = 0x4, fixed_abs, tag = 'smem constant byte address 0x4 - core index']
  #allocation1 [shape = 'u32[144,128]{1,0:T(1,128)}', space=vmem, size = 0x12000, scoped, tag = 'internal scratch']
  %s0 = inlined_call_operand.hbm [shape: f32[2,4,256], index: 0, kind: input, shape index: {}]
  %s1 = inlined_call_operand.hbm [shape: f32[5,32], index: 1, kind: input, shape index: {}]
  %s2 = inlined_call_operand.hbm [shape: f32[33,128], index: 2, kind: input, shape index: {}]
  %s3 = inlined_call_operand.hbm [shape: f32[2,128], index: 3, kind: output, shape index: {}]
  %s4 = sld [smem:[#allocation0]]
  $region34: #{tpu_custom_call.1} parent=0
    _
  %s6 = ssub.s32 1, %s4
  %s7 = scalar_select 0, %s6, %s4
  $region1: #{tpu_custom_call.1} parent=0
    #allocation2 [shape = 'u8[8192]{0}', space=vmem, size = 0x2000, scoped, tag = 'input window, operand 0, single buffered']
    #allocation3 [shape = 's32[1]{0}', space=sflag, size = 0x4, scoped, tag = 'scoped memory for tpu_custom_call.1']
    #allocation4 [shape = 's32[1]{0}', space=sflag, size = 0x4, scoped, tag = 'scoped memory for tpu_custom_call.1']
    #allocation5 [shape = 'u8[4096]{0}', space=vmem, size = 0x1000, scoped, tag = 'input window, operand 1, single buffered']
    #allocation6 [shape = 's32[1]{0}', space=sflag, size = 0x4, scoped, tag = 'scoped memory for tpu_custom_call.1']
    #allocation7 [shape = 'u8[20480]{0}', space=vmem, size = 0x5000, scoped, tag = 'input window, operand 2, single buffered']
    #allocation8 [shape = 'u8[1024]{0}', space=vmem, size = 0x400, scoped, tag = 'output window, operand 0, single buffered']
    %8 = vsyncpa [#allocation3], 0
    %9 = vsyncpa [#allocation6], 0
    %10 = vsyncpa [#allocation4], 0
    // Predicated region
    $region2: #{tpu_custom_call.1} parent=1 // pred_check
      _
    $region3: #{tpu_custom_call.1} parent=1 // pred_check_branch
      %12 = sbr.rel (0) target = $region5
    $region4: #{tpu_custom_call.1} parent=1 // pred_region
      %s14 = ssub.s32 256, 256
      %15 = vsyncadd [#allocation3], %s14
      %s16 = sshll.u32 [#allocation2], 4
      %s17 = int_to_ptr.vmem [resolvable:$true] %s16
      %22 = dma.hbm_to_vmem [thread:$0]  %s0, 256, %s17, [#allocation3], 128, 128, 8
    $region5: #{tpu_custom_call.1} parent=1 // pred_fallthru
      _
    // Predicated region
    $region6: #{tpu_custom_call.1} parent=1 // pred_check
      _
    $region7: #{tpu_custom_call.1} parent=1 // pred_check_branch
      %24 = sbr.rel (0) target = $region9
    $region8: #{tpu_custom_call.1} parent=1 // pred_region
      %s26 = ssub.s32 128, 128
      %27 = vsyncadd [#allocation6], %s26
      %s29 = sshll.u32 [#allocation5], 4
      %s30 = int_to_ptr.vmem [resolvable:$true] %s29
      %32 = dma.hbm_to_vmem [thread:$0]  %s1, 128, %s30, [#allocation6]
    $region9: #{tpu_custom_call.1} parent=1 // pred_fallthru
      _
    // Predicated region
    $region10: #{tpu_custom_call.1} parent=1 // pred_check
      _
    $region11: #{tpu_custom_call.1} parent=1 // pred_check_branch
      %34 = sbr.rel (0) target = $region13
    $region12: #{tpu_custom_call.1} parent=1 // pred_region
      %s36 = ssub.s32 640, 640
      %37 = vsyncadd [#allocation6], %s36
      %s38 = sshll.u32 [#allocation7], 4
      %s39 = int_to_ptr.vmem [resolvable:$true] %s38
      %44 = dma.hbm_to_vmem [thread:$0]  %s2, 640, %s39, [#allocation6], 128, 128, 8
    $region13: #{tpu_custom_call.1} parent=1 // pred_fallthru
      _
    // Predicated region
    $region14: #{tpu_custom_call.1} parent=1 // pred_check
      _
    $region15: #{tpu_custom_call.1} parent=1 // pred_check_branch
      %46 = sbr.rel (0) target = $region17
    $region16: #{tpu_custom_call.1} parent=1 // pred_region
      %47 = dma.done [#allocation3], 256
    $region17: #{tpu_custom_call.1} parent=1 // pred_fallthru
      _
    // Predicated region
    $region18: #{tpu_custom_call.1} parent=1 // pred_check
      _
    $region19: #{tpu_custom_call.1} parent=1 // pred_check_branch
      %49 = sbr.rel (0) target = $region21
    $region20: #{tpu_custom_call.1} parent=1 // pred_region
      %50 = dma.done [#allocation6], 128
    $region21: #{tpu_custom_call.1} parent=1 // pred_fallthru
      _
    // Predicated region
    $region22: #{tpu_custom_call.1} parent=1 // pred_check
      _
    $region23: #{tpu_custom_call.1} parent=1 // pred_check_branch
      %52 = sbr.rel (0) target = $region25
    $region24: #{tpu_custom_call.1} parent=1 // pred_region
      %53 = dma.done [#allocation6], 640
    $region25: #{tpu_custom_call.1} parent=1 // pred_fallthru
      _
    %v54 = vld [vmem:[#allocation5] sm:$0xf]
    %v55 = vld [vmem:[#allocation5 + $0x4] sm:$0x1]
    %v56 = vld [vmem:[#allocation2] sm:$0xff]
    %v57 = vlaneseq
    %v58 = vshrl.u32 %v57, 7
    %v59 = vsub.s32 0, %v58
    %v60 = vrot.slane %v55, %v59
    %v62 = vcombine.high %v56, %v56
    %64 = vxpose.xlu0.b32.start [1/16] %v56, 128
    %65 = vxpose.xlu0.b32.cont [2/16] 0.0, 128
    %66 = vxpose.xlu0.b32.cont [3/16] 0.0, 128
    %67 = vxpose.xlu0.b32.cont [4/16] 0.0, 128
    %68 = vxpose.xlu0.b32.cont [5/16] 0.0, 128
    %69 = vxpose.xlu0.b32.cont [6/16] 0.0, 128
    %70 = vxpose.xlu0.b32.cont [7/16] 0.0, 128
    %71 = vxpose.xlu0.b32.cont [8/16] 0.0, 128
    %72 = vxpose.xlu0.b32.cont [9/16] 0.0, 128
    %73 = vxpose.xlu0.b32.cont [10/16] 0.0, 128
    %74 = vxpose.xlu0.b32.cont [11/16] 0.0, 128
    %75 = vxpose.xlu0.b32.cont [12/16] 0.0, 128
    %76 = vxpose.xlu0.b32.cont [13/16] 0.0, 128
    %77 = vxpose.xlu0.b32.cont [14/16] 0.0, 128
    %78 = vxpose.xlu0.b32.cont [15/16] 0.0, 128
    %79 = vxpose.xlu0.b32.end [16/16] 0.0, 128
    %v80 = vpop.trf.xlu0
    %v81 = vpop.trf.xlu0
    %v82 = vpop.trf.xlu0
    %v83 = vpop.trf.xlu0
    %v84 = vpop.trf.xlu0
    %v85 = vpop.trf.xlu0
    %v86 = vpop.trf.xlu0
    %v87 = vpop.trf.xlu0
    %v88 = vpop.trf.xlu0
    %v89 = vpop.trf.xlu0
    %v90 = vpop.trf.xlu0
    %v91 = vpop.trf.xlu0
    %v92 = vpop.trf.xlu0
    %v93 = vpop.trf.xlu0
    %v94 = vpop.trf.xlu0
    %v95 = vpop.trf.xlu0
    %96 = vxpose.xlu0.b32.start [1/16] %v62, 128
    %97 = vxpose.xlu0.b32.cont [2/16] 0.0, 128
    %98 = vxpose.xlu0.b32.cont [3/16] 0.0, 128
    %99 = vxpose.xlu0.b32.cont [4/16] 0.0, 128
    %100 = vxpose.xlu0.b32.cont [5/16] 0.0, 128
    %101 = vxpose.xlu0.b32.cont [6/16] 0.0, 128
    %102 = vxpose.xlu0.b32.cont [7/16] 0.0, 128
    %103 = vxpose.xlu0.b32.cont [8/16] 0.0, 128
    %104 = vxpose.xlu0.b32.cont [9/16] 0.0, 128
    %105 = vxpose.xlu0.b32.cont [10/16] 0.0, 128
    %106 = vxpose.xlu0.b32.cont [11/16] 0.0, 128
    %107 = vxpose.xlu0.b32.cont [12/16] 0.0, 128
    %108 = vxpose.xlu0.b32.cont [13/16] 0.0, 128
    %109 = vxpose.xlu0.b32.cont [14/16] 0.0, 128
    %110 = vxpose.xlu0.b32.cont [15/16] 0.0, 128
    %111 = vxpose.xlu0.b32.end [16/16] 0.0, 128
    %v112 = vpop.trf.xlu0
    %v113 = vpop.trf.xlu0
    %v114 = vpop.trf.xlu0
    %v115 = vpop.trf.xlu0
    %v116 = vpop.trf.xlu0
    %v117 = vpop.trf.xlu0
    %v118 = vpop.trf.xlu0
    %v119 = vpop.trf.xlu0
    %v120 = vpop.trf.xlu0
    %v121 = vpop.trf.xlu0
    %v122 = vpop.trf.xlu0
    %v123 = vpop.trf.xlu0
    %v124 = vpop.trf.xlu0
    %v125 = vpop.trf.xlu0
    %v126 = vpop.trf.xlu0
    %v127 = vpop.trf.xlu0
    %vm128 = vcmask 31744
    %v130 = vsel %vm128, %v80, 0
    %v133 = vsel %vm128, %v81, 0
    %v136 = vsel %vm128, %v82, 0
    %v139 = vsel %vm128, %v83, 0
    %v142 = vsel %vm128, %v84, 0
    %v145 = vsel %vm128, %v85, 0
    %v148 = vsel %vm128, %v86, 0
    %v151 = vsel %vm128, %v87, 0
    %v154 = vsel %vm128, %v88, 0
    %v157 = vsel %vm128, %v89, 0
    %v160 = vsel %vm128, %v90, 0
    %v163 = vsel %vm128, %v91, 0
    %v166 = vsel %vm128, %v92, 0
    %v169 = vsel %vm128, %v93, 0
    %v172 = vsel %vm128, %v94, 0
    %v175 = vsel %vm128, %v95, 0
    %v178 = vsel %vm128, %v112, 0
    %v181 = vsel %vm128, %v113, 0
    %v184 = vsel %vm128, %v114, 0
    %v187 = vsel %vm128, %v115, 0
    %v190 = vsel %vm128, %v116, 0
    %v193 = vsel %vm128, %v117, 0
    %v196 = vsel %vm128, %v118, 0
    %v199 = vsel %vm128, %v119, 0
    %v202 = vsel %vm128, %v120, 0
    %v205 = vsel %vm128, %v121, 0
    %v208 = vsel %vm128, %v122, 0
    %v211 = vsel %vm128, %v123, 0
    %v214 = vsel %vm128, %v124, 0
    %v217 = vsel %vm128, %v125, 0
    %v220 = vsel %vm128, %v126, 0
    %v223 = vsel %vm128, %v127, 0
    %vm225 = vcmask 1043456
    %v227 = vsel %vm225, %v54, 0
    %229 = vmatprep.subr.mxu0 0.0
    %230 = vmatpush1.msra.mxu0 %v227
    %231 = vmatprep.subr.mxu0 0.0
    %232 = vmatpush1.msra.mxu0 0.0
    %233 = vmatprep.subr.mxu0 0.0
    %234 = vmatpush1.msra.mxu0 0.0
    %235 = vmatprep.subr.mxu0 0.0
    %236 = vmatpush1.msra.mxu0 0.0
    %237 = vmatprep.subr.mxu0 0.0
    %238 = vmatpush1.msra.mxu0 0.0
    %239 = vmatprep.subr.mxu0 0.0
    %240 = vmatpush1.msra.mxu0 0.0
    %241 = vmatprep.subr.mxu0 0.0
    %242 = vmatpush1.msra.mxu0 0.0
    %243 = vmatprep.subr.mxu0 0.0
    %244 = vmatpush1.msra.mxu0 0.0
    %245 = vmatprep.subr.mxu0 0.0
    %246 = vmatpush1.msra.mxu0 0.0
    %247 = vmatprep.subr.mxu0 0.0
    %248 = vmatpush1.msra.mxu0 0.0
    %249 = vmatprep.subr.mxu0 0.0
    %250 = vmatpush1.msra.mxu0 0.0
    %251 = vmatprep.subr.mxu0 0.0
    %252 = vmatpush1.msra.mxu0 0.0
    %253 = vmatprep.subr.mxu0 0.0
    %254 = vmatpush1.msra.mxu0 0.0
    %255 = vmatprep.subr.mxu0 0.0
    %256 = vmatpush1.msra.mxu0 0.0
    %257 = vmatprep.subr.mxu0 0.0
    %258 = vmatpush1.msra.mxu0 0.0
    %259 = vmatprep.subr.mxu0 0.0
    %260 = vmatpush1.msra.mxu0 0.0
    %261 = vmatprep.subr.mxu0 0.0
    %262 = vmatpush1.msra.mxu0 0.0
    %263 = vmatprep.subr.mxu0 0.0
    %264 = vmatpush1.msra.mxu0 0.0
    %265 = vmatprep.subr.mxu0 0.0
    %266 = vmatpush1.msra.mxu0 0.0
    %267 = vmatprep.subr.mxu0 0.0
    %268 = vmatpush1.msra.mxu0 0.0
    %269 = vmatprep.subr.mxu0 0.0
    %270 = vmatpush1.msra.mxu0 0.0
    %271 = vmatprep.subr.mxu0 0.0
    %272 = vmatpush1.msra.mxu0 0.0
    %273 = vmatprep.subr.mxu0 0.0
    %274 = vmatpush1.msra.mxu0 0.0
    %275 = vmatprep.subr.mxu0 0.0
    %276 = vmatpush1.msra.mxu0 0.0
    %277 = vmatprep.subr.mxu0 0.0
    %278 = vmatpush1.msra.mxu0 0.0
    %279 = vmatprep.subr.mxu0 0.0
    %280 = vmatpush1.msra.mxu0 0.0
    %281 = vmatprep.subr.mxu0 0.0
    %282 = vmatpush1.msra.mxu0 0.0
    %283 = vmatprep.subr.mxu0 0.0
    %284 = vmatpush1.msra.mxu0 0.0
    %285 = vmatprep.subr.mxu0 0.0
    %286 = vmatpush1.msra.mxu0 0.0
    %287 = vmatprep.subr.mxu0 0.0
    %288 = vmatpush1.msra.mxu0 0.0
    %289 = vmatprep.subr.mxu0 0.0
    %290 = vmatpush1.msra.mxu0 0.0
    %291 = vmatprep.subr.mxu0 0.0
    %292 = vmatpush1.msra.mxu0 0.0
    %293 = vmatprep.mubr.f32.mxu0 0.0
    %294 = vmatmul.mubr.f32.gmra.mrb[0].mxu0 %v130
    %v295 = vpop.f32.mrb[0].mxu0
    %v296 = vadd.f32 %v60, %v295
    %v297 = vpop.f32.mrb[0].mxu0
    %298 = vmatprep.mubr.f32.mxu0 0.0
    %299 = vmatmul.mubr.f32.gmra.mrb[0].mxu0 %v133
    %v300 = vpop.f32.mrb[0].mxu0
    %v301 = vadd.f32 %v60, %v300
    %v302 = vpop.f32.mrb[0].mxu0
    %303 = vmatprep.mubr.f32.mxu0 0.0
    %304 = vmatmul.mubr.f32.gmra.mrb[0].mxu0 %v136
    %v305 = vpop.f32.mrb[0].mxu0
    %v306 = vadd.f32 %v60, %v305
    %v307 = vpop.f32.mrb[0].mxu0
    %308 = vmatprep.mubr.f32.mxu0 0.0
    %309 = vmatmul.mubr.f32.gmra.mrb[0].mxu0 %v139
    %v310 = vpop.f32.mrb[0].mxu0
    %v311 = vadd.f32 %v60, %v310
    %v312 = vpop.f32.mrb[0].mxu0
    %313 = vmatprep.mubr.f32.mxu0 0.0
    %314 = vmatmul.mubr.f32.gmra.mrb[0].mxu0 %v142
    %v315 = vpop.f32.mrb[0].mxu0
    %v316 = vadd.f32 %v60, %v315
    %v317 = vpop.f32.mrb[0].mxu0
    %318 = vmatprep.mubr.f32.mxu0 0.0
    %319 = vmatmul.mubr.f32.gmra.mrb[0].mxu0 %v145
    %v320 = vpop.f32.mrb[0].mxu0
    %v321 = vadd.f32 %v60, %v320
    %v322 = vpop.f32.mrb[0].mxu0
    %323 = vmatprep.mubr.f32.mxu0 0.0
    %324 = vmatmul.mubr.f32.gmra.mrb[0].mxu0 %v148
    %v325 = vpop.f32.mrb[0].mxu0
    %v326 = vadd.f32 %v60, %v325
    %v327 = vpop.f32.mrb[0].mxu0
    %328 = vmatprep.mubr.f32.mxu0 0.0
    %329 = vmatmul.mubr.f32.gmra.mrb[0].mxu0 %v151
    %v330 = vpop.f32.mrb[0].mxu0
    %v331 = vadd.f32 %v60, %v330
    %v332 = vpop.f32.mrb[0].mxu0
    %333 = vmatprep.mubr.f32.mxu0 0.0
    %334 = vmatmul.mubr.f32.gmra.mrb[0].mxu0 %v154
    %v335 = vpop.f32.mrb[0].mxu0
    %v336 = vadd.f32 %v60, %v335
    %v337 = vpop.f32.mrb[0].mxu0
    %338 = vmatprep.mubr.f32.mxu0 0.0
    %339 = vmatmul.mubr.f32.gmra.mrb[0].mxu0 %v157
    %v340 = vpop.f32.mrb[0].mxu0
    %v341 = vadd.f32 %v60, %v340
    %v342 = vpop.f32.mrb[0].mxu0
    %343 = vmatprep.mubr.f32.mxu0 0.0
    %344 = vmatmul.mubr.f32.gmra.mrb[0].mxu0 %v160
    %v345 = vpop.f32.mrb[0].mxu0
    %v346 = vadd.f32 %v60, %v345
    %v347 = vpop.f32.mrb[0].mxu0
    %348 = vmatprep.mubr.f32.mxu0 0.0
    %349 = vmatmul.mubr.f32.gmra.mrb[0].mxu0 %v163
    %v350 = vpop.f32.mrb[0].mxu0
    %v351 = vadd.f32 %v60, %v350
    %v352 = vpop.f32.mrb[0].mxu0
    %353 = vmatprep.mubr.f32.mxu0 0.0
    %354 = vmatmul.mubr.f32.gmra.mrb[0].mxu0 %v166
    %v355 = vpop.f32.mrb[0].mxu0
    %v356 = vadd.f32 %v60, %v355
    %v357 = vpop.f32.mrb[0].mxu0
    %358 = vmatprep.mubr.f32.mxu0 0.0
    %359 = vmatmul.mubr.f32.gmra.mrb[0].mxu0 %v169
    %v360 = vpop.f32.mrb[0].mxu0
    %v361 = vadd.f32 %v60, %v360
    %v362 = vpop.f32.mrb[0].mxu0
    %363 = vmatprep.mubr.f32.mxu0 0.0
    %364 = vmatmul.mubr.f32.gmra.mrb[0].mxu0 %v172
    %v365 = vpop.f32.mrb[0].mxu0
    %v366 = vadd.f32 %v60, %v365
    %v367 = vpop.f32.mrb[0].mxu0
    %368 = vmatprep.mubr.f32.mxu0 0.0
    %369 = vmatmul.mubr.f32.gmra.mrb[0].mxu0 %v175
    %v370 = vpop.f32.mrb[0].mxu0
    %v371 = vadd.f32 %v60, %v370
    %v372 = vpop.f32.mrb[0].mxu0
    %373 = vmatprep.mubr.f32.mxu0 0.0
    %374 = vmatmul.mubr.f32.gmra.mrb[0].mxu0 %v178
    %v375 = vpop.f32.mrb[0].mxu0
    %v376 = vadd.f32 %v60, %v375
    %v377 = vpop.f32.mrb[0].mxu0
    %378 = vmatprep.mubr.f32.mxu0 0.0
    %379 = vmatmul.mubr.f32.gmra.mrb[0].mxu0 %v181
    %v380 = vpop.f32.mrb[0].mxu0
    %v381 = vadd.f32 %v60, %v380
    %v382 = vpop.f32.mrb[0].mxu0
    %383 = vmatprep.mubr.f32.mxu0 0.0
    %384 = vmatmul.mubr.f32.gmra.mrb[0].mxu0 %v184
    %v385 = vpop.f32.mrb[0].mxu0
    %v386 = vadd.f32 %v60, %v385
    %v387 = vpop.f32.mrb[0].mxu0
    %388 = vmatprep.mubr.f32.mxu0 0.0
    %389 = vmatmul.mubr.f32.gmra.mrb[0].mxu0 %v187
    %v390 = vpop.f32.mrb[0].mxu0
    %v391 = vadd.f32 %v60, %v390
    %v392 = vpop.f32.mrb[0].mxu0
    %393 = vmatprep.mubr.f32.mxu0 0.0
    %394 = vmatmul.mubr.f32.gmra.mrb[0].mxu0 %v190
    %v395 = vpop.f32.mrb[0].mxu0
    %v396 = vadd.f32 %v60, %v395
    %v397 = vpop.f32.mrb[0].mxu0
    %398 = vmatprep.mubr.f32.mxu0 0.0
    %399 = vmatmul.mubr.f32.gmra.mrb[0].mxu0 %v193
    %v400 = vpop.f32.mrb[0].mxu0
    %v401 = vadd.f32 %v60, %v400
    %v402 = vpop.f32.mrb[0].mxu0
    %403 = vmatprep.mubr.f32.mxu0 0.0
    %404 = vmatmul.mubr.f32.gmra.mrb[0].mxu0 %v196
    %v405 = vpop.f32.mrb[0].mxu0
    %v406 = vadd.f32 %v60, %v405
    %v407 = vpop.f32.mrb[0].mxu0
    %408 = vmatprep.mubr.f32.mxu0 0.0
    %409 = vmatmul.mubr.f32.gmra.mrb[0].mxu0 %v199
    %v410 = vpop.f32.mrb[0].mxu0
    %v411 = vadd.f32 %v60, %v410
    %v412 = vpop.f32.mrb[0].mxu0
    %413 = vmatprep.mubr.f32.mxu0 0.0
    %414 = vmatmul.mubr.f32.gmra.mrb[0].mxu0 %v202
    %v415 = vpop.f32.mrb[0].mxu0
    %v416 = vadd.f32 %v60, %v415
    %v417 = vpop.f32.mrb[0].mxu0
    %418 = vmatprep.mubr.f32.mxu0 0.0
    %419 = vmatmul.mubr.f32.gmra.mrb[0].mxu0 %v205
    %v420 = vpop.f32.mrb[0].mxu0
    %v421 = vadd.f32 %v60, %v420
    %v422 = vpop.f32.mrb[0].mxu0
    %423 = vmatprep.mubr.f32.mxu0 0.0
    %424 = vmatmul.mubr.f32.gmra.mrb[0].mxu0 %v208
    %v425 = vpop.f32.mrb[0].mxu0
    %v426 = vadd.f32 %v60, %v425
    %v427 = vpop.f32.mrb[0].mxu0
    %428 = vmatprep.mubr.f32.mxu0 0.0
    %429 = vmatmul.mubr.f32.gmra.mrb[0].mxu0 %v211
    %v430 = vpop.f32.mrb[0].mxu0
    %v431 = vadd.f32 %v60, %v430
    %v432 = vpop.f32.mrb[0].mxu0
    %433 = vmatprep.mubr.f32.mxu0 0.0
    %434 = vmatmul.mubr.f32.gmra.mrb[0].mxu0 %v214
    %v435 = vpop.f32.mrb[0].mxu0
    %v436 = vadd.f32 %v60, %v435
    %v437 = vpop.f32.mrb[0].mxu0
    %438 = vmatprep.mubr.f32.mxu0 0.0
    %439 = vmatmul.mubr.f32.gmra.mrb[0].mxu0 %v217
    %v440 = vpop.f32.mrb[0].mxu0
    %v441 = vadd.f32 %v60, %v440
    %v442 = vpop.f32.mrb[0].mxu0
    %443 = vmatprep.mubr.f32.mxu0 0.0
    %444 = vmatmul.mubr.f32.gmra.mrb[0].mxu0 %v220
    %v445 = vpop.f32.mrb[0].mxu0
    %v446 = vadd.f32 %v60, %v445
    %v447 = vpop.f32.mrb[0].mxu0
    %448 = vmatprep.mubr.f32.mxu0 0.0
    %449 = vmatmul.mubr.f32.gmra.mrb[0].mxu0 %v223
    %v450 = vpop.f32.mrb[0].mxu0
    %v451 = vadd.f32 %v60, %v450
    %v452 = vpop.f32.mrb[0].mxu0
    %453 = vdwg.mxu0
    %v454 = vmax.f32 %v296, 0.0
    %v455 = vmax.f32 %v301, 0.0
    %v456 = vmax.f32 %v306, 0.0
    %v457 = vmax.f32 %v311, 0.0
    %v458 = vmax.f32 %v316, 0.0
    %v459 = vmax.f32 %v321, 0.0
    %v460 = vmax.f32 %v326, 0.0
    %v461 = vmax.f32 %v331, 0.0
    %v462 = vmax.f32 %v336, 0.0
    %v463 = vmax.f32 %v341, 0.0
    %v464 = vmax.f32 %v346, 0.0
    %v465 = vmax.f32 %v351, 0.0
    %v466 = vmax.f32 %v356, 0.0
    %v467 = vmax.f32 %v361, 0.0
    %v468 = vmax.f32 %v366, 0.0
    %v469 = vmax.f32 %v371, 0.0
    %v470 = vmax.f32 %v376, 0.0
    %v471 = vmax.f32 %v381, 0.0
    %v472 = vmax.f32 %v386, 0.0
    %v473 = vmax.f32 %v391, 0.0
    %v474 = vmax.f32 %v396, 0.0
    %v475 = vmax.f32 %v401, 0.0
    %v476 = vmax.f32 %v406, 0.0
    %v477 = vmax.f32 %v411, 0.0
    %v478 = vmax.f32 %v416, 0.0
    %v479 = vmax.f32 %v421, 0.0
    %v480 = vmax.f32 %v426, 0.0
    %v481 = vmax.f32 %v431, 0.0
    %v482 = vmax.f32 %v436, 0.0
    %v483 = vmax.f32 %v441, 0.0
    %v484 = vmax.f32 %v446, 0.0
    %v485 = vmax.f32 %v451, 0.0
    %vm486 = vcmask 261120
    %v487 = vsel %vm486, %v454, 0.0
    %v488 = vsel %vm486, %v455, 0.0
    %v489 = vadd.f32 %v487, %v488
    %v490 = vsel %vm486, %v456, 0.0
    %v491 = vadd.f32 %v489, %v490
    %v492 = vsel %vm486, %v457, 0.0
    %v493 = vadd.f32 %v491, %v492
    %v494 = vsel %vm486, %v458, 0.0
    %v495 = vadd.f32 %v493, %v494
    %v496 = vsel %vm486, %v459, 0.0
    %v497 = vadd.f32 %v495, %v496
    %v498 = vsel %vm486, %v460, 0.0
    %v499 = vadd.f32 %v497, %v498
    %v500 = vsel %vm486, %v461, 0.0
    %v501 = vadd.f32 %v499, %v500
    %v502 = vsel %vm486, %v462, 0.0
    %v503 = vadd.f32 %v501, %v502
    %v504 = vsel %vm486, %v463, 0.0
    %v505 = vadd.f32 %v503, %v504
    %v506 = vsel %vm486, %v464, 0.0
    %v507 = vadd.f32 %v505, %v506
    %v508 = vsel %vm486, %v465, 0.0
    %v509 = vadd.f32 %v507, %v508
    %v510 = vsel %vm486, %v466, 0.0
    %v511 = vadd.f32 %v509, %v510
    %v512 = vsel %vm486, %v467, 0.0
    %v513 = vadd.f32 %v511, %v512
    %v514 = vsel %vm486, %v468, 0.0
    %v515 = vadd.f32 %v513, %v514
    %v516 = vsel %vm486, %v469, 0.0
    %v517 = vadd.f32 %v515, %v516
    %v518 = vsel %vm486, %v470, 0.0
    %v519 = vadd.f32 %v517, %v518
    %v520 = vsel %vm486, %v471, 0.0
    %v521 = vadd.f32 %v519, %v520
    %v522 = vsel %vm486, %v472, 0.0
    %v523 = vadd.f32 %v521, %v522
    %v524 = vsel %vm486, %v473, 0.0
    %v525 = vadd.f32 %v523, %v524
    %v526 = vsel %vm486, %v474, 0.0
    %v527 = vadd.f32 %v525, %v526
    %v528 = vsel %vm486, %v475, 0.0
    %v529 = vadd.f32 %v527, %v528
    %v530 = vsel %vm486, %v476, 0.0
    %v531 = vadd.f32 %v529, %v530
    %v532 = vsel %vm486, %v477, 0.0
    %v533 = vadd.f32 %v531, %v532
    %v534 = vsel %vm486, %v478, 0.0
    %v535 = vadd.f32 %v533, %v534
    %v536 = vsel %vm486, %v479, 0.0
    %v537 = vadd.f32 %v535, %v536
    %v538 = vsel %vm486, %v480, 0.0
    %v539 = vadd.f32 %v537, %v538
    %v540 = vsel %vm486, %v481, 0.0
    %v541 = vadd.f32 %v539, %v540
    %v542 = vsel %vm486, %v482, 0.0
    %v543 = vadd.f32 %v541, %v542
    %v544 = vsel %vm486, %v483, 0.0
    %v545 = vadd.f32 %v543, %v544
    %v546 = vsel %vm486, %v484, 0.0
    %v547 = vadd.f32 %v545, %v546
    %v548 = vsel %vm486, %v485, 0.0
    %v549 = vadd.f32 %v547, %v548
    %v550 = vrot.slane %v549, 4
    %v551 = vadd.f32 %v549, %v550
    %v552 = vrot.slane %v551, 2
    %v553 = vadd.f32 %v551, %v552
    %v554 = vrot.slane %v553, 1
    %v555 = vadd.f32 %v553, %v554
    %v556 = vrcp.pop 256.0
    %v557 = vmul.f32 %v555, %v556
    %s558 = scalar_lea.vmem [#allocation2], 8
    %v559 = vld [vmem:[%s558] sm:$0xff]
    %v561 = vcombine.high %v559, %v559
    %563 = vxpose.xlu0.b32.start [1/16] %v559, 128
    %564 = vxpose.xlu0.b32.cont [2/16] 0.0, 128
    %565 = vxpose.xlu0.b32.cont [3/16] 0.0, 128
    %566 = vxpose.xlu0.b32.cont [4/16] 0.0, 128
    %567 = vxpose.xlu0.b32.cont [5/16] 0.0, 128
    %568 = vxpose.xlu0.b32.cont [6/16] 0.0, 128
    %569 = vxpose.xlu0.b32.cont [7/16] 0.0, 128
    %570 = vxpose.xlu0.b32.cont [8/16] 0.0, 128
    %571 = vxpose.xlu0.b32.cont [9/16] 0.0, 128
    %572 = vxpose.xlu0.b32.cont [10/16] 0.0, 128
    %573 = vxpose.xlu0.b32.cont [11/16] 0.0, 128
    %574 = vxpose.xlu0.b32.cont [12/16] 0.0, 128
    %575 = vxpose.xlu0.b32.cont [13/16] 0.0, 128
    %576 = vxpose.xlu0.b32.cont [14/16] 0.0, 128
    %577 = vxpose.xlu0.b32.cont [15/16] 0.0, 128
    %578 = vxpose.xlu0.b32.end [16/16] 0.0, 128
    %v579 = vpop.trf.xlu0
    %v580 = vpop.trf.xlu0
    %v581 = vpop.trf.xlu0
    %v582 = vpop.trf.xlu0
    %v583 = vpop.trf.xlu0
    %v584 = vpop.trf.xlu0
    %v585 = vpop.trf.xlu0
    %v586 = vpop.trf.xlu0
    %v587 = vpop.trf.xlu0
    %v588 = vpop.trf.xlu0
    %v589 = vpop.trf.xlu0
    %v590 = vpop.trf.xlu0
    %v591 = vpop.trf.xlu0
    %v592 = vpop.trf.xlu0
    %v593 = vpop.trf.xlu0
    %v594 = vpop.trf.xlu0
    %595 = vxpose.xlu0.b32.start [1/16] %v561, 128
    %596 = vxpose.xlu0.b32.cont [2/16] 0.0, 128
    %597 = vxpose.xlu0.b32.cont [3/16] 0.0, 128
    %598 = vxpose.xlu0.b32.cont [4/16] 0.0, 128
    %599 = vxpose.xlu0.b32.cont [5/16] 0.0, 128
    %600 = vxpose.xlu0.b32.cont [6/16] 0.0, 128
    %601 = vxpose.xlu0.b32.cont [7/16] 0.0, 128
    %602 = vxpose.xlu0.b32.cont [8/16] 0.0, 128
    %603 = vxpose.xlu0.b32.cont [9/16] 0.0, 128
    %604 = vxpose.xlu0.b32.cont [10/16] 0.0, 128
    %605 = vxpose.xlu0.b32.cont [11/16] 0.0, 128
    %606 = vxpose.xlu0.b32.cont [12/16] 0.0, 128
    %607 = vxpose.xlu0.b32.cont [13/16] 0.0, 128
    %608 = vxpose.xlu0.b32.cont [14/16] 0.0, 128
    %609 = vxpose.xlu0.b32.cont [15/16] 0.0, 128
    %610 = vxpose.xlu0.b32.end [16/16] 0.0, 128
    %v611 = vpop.trf.xlu0
    %v612 = vpop.trf.xlu0
    %v613 = vpop.trf.xlu0
    %v614 = vpop.trf.xlu0
    %v615 = vpop.trf.xlu0
    %v616 = vpop.trf.xlu0
    %v617 = vpop.trf.xlu0
    %v618 = vpop.trf.xlu0
    %v619 = vpop.trf.xlu0
    %v620 = vpop.trf.xlu0
    %v621 = vpop.trf.xlu0
    %v622 = vpop.trf.xlu0
    %v623 = vpop.trf.xlu0
    %v624 = vpop.trf.xlu0
    %v625 = vpop.trf.xlu0
    %v626 = vpop.trf.xlu0
    %v628 = vsel %vm128, %v579, 0
    %v631 = vsel %vm128, %v580, 0
    %v634 = vsel %vm128, %v581, 0
    %v637 = vsel %vm128, %v582, 0
    %v640 = vsel %vm128, %v583, 0
    %v643 = vsel %vm128, %v584, 0
    %v646 = vsel %vm128, %v585, 0
    %v649 = vsel %vm128, %v586, 0
    %v652 = vsel %vm128, %v587, 0
    %v655 = vsel %vm128, %v588, 0
    %v658 = vsel %vm128, %v589, 0
    %v661 = vsel %vm128, %v590, 0
    %v664 = vsel %vm128, %v591, 0
    %v667 = vsel %vm128, %v592, 0
    %v670 = vsel %vm128, %v593, 0
    %v673 = vsel %vm128, %v594, 0
    %v676 = vsel %vm128, %v611, 0
    %v679 = vsel %vm128, %v612, 0
    %v682 = vsel %vm128, %v613, 0
    %v685 = vsel %vm128, %v614, 0
    %v688 = vsel %vm128, %v615, 0
    %v691 = vsel %vm128, %v616, 0
    %v694 = vsel %vm128, %v617, 0
    %v697 = vsel %vm128, %v618, 0
    %v700 = vsel %vm128, %v619, 0
    %v703 = vsel %vm128, %v620, 0
    %v706 = vsel %vm128, %v621, 0
    %v709 = vsel %vm128, %v622, 0
    %v712 = vsel %vm128, %v623, 0
    %v715 = vsel %vm128, %v624, 0
    %v718 = vsel %vm128, %v625, 0
    %v721 = vsel %vm128, %v626, 0
    %723 = vmatprep.subr.mxu0 0.0
    %724 = vmatpush1.msra.mxu0 %v227
    %725 = vmatprep.subr.mxu0 0.0
    %726 = vmatpush1.msra.mxu0 0.0
    %727 = vmatprep.subr.mxu0 0.0
    %728 = vmatpush1.msra.mxu0 0.0
    %729 = vmatprep.subr.mxu0 0.0
    %730 = vmatpush1.msra.mxu0 0.0
    %731 = vmatprep.subr.mxu0 0.0
    %732 = vmatpush1.msra.mxu0 0.0
    %733 = vmatprep.subr.mxu0 0.0
    %734 = vmatpush1.msra.mxu0 0.0
    %735 = vmatprep.subr.mxu0 0.0
    %736 = vmatpush1.msra.mxu0 0.0
    %737 = vmatprep.subr.mxu0 0.0
    %738 = vmatpush1.msra.mxu0 0.0
    %739 = vmatprep.subr.mxu0 0.0
    %740 = vmatpush1.msra.mxu0 0.0
    %741 = vmatprep.subr.mxu0 0.0
    %742 = vmatpush1.msra.mxu0 0.0
    %743 = vmatprep.subr.mxu0 0.0
    %744 = vmatpush1.msra.mxu0 0.0
    %745 = vmatprep.subr.mxu0 0.0
    %746 = vmatpush1.msra.mxu0 0.0
    %747 = vmatprep.subr.mxu0 0.0
    %748 = vmatpush1.msra.mxu0 0.0
    %749 = vmatprep.subr.mxu0 0.0
    %750 = vmatpush1.msra.mxu0 0.0
    %751 = vmatprep.subr.mxu0 0.0
    %752 = vmatpush1.msra.mxu0 0.0
    %753 = vmatprep.subr.mxu0 0.0
    %754 = vmatpush1.msra.mxu0 0.0
    %755 = vmatprep.subr.mxu0 0.0
    %756 = vmatpush1.msra.mxu0 0.0
    %757 = vmatprep.subr.mxu0 0.0
    %758 = vmatpush1.msra.mxu0 0.0
    %759 = vmatprep.subr.mxu0 0.0
    %760 = vmatpush1.msra.mxu0 0.0
    %761 = vmatprep.subr.mxu0 0.0
    %762 = vmatpush1.msra.mxu0 0.0
    %763 = vmatprep.subr.mxu0 0.0
    %764 = vmatpush1.msra.mxu0 0.0
    %765 = vmatprep.subr.mxu0 0.0
    %766 = vmatpush1.msra.mxu0 0.0
    %767 = vmatprep.subr.mxu0 0.0
    %768 = vmatpush1.msra.mxu0 0.0
    %769 = vmatprep.subr.mxu0 0.0
    %770 = vmatpush1.msra.mxu0 0.0
    %771 = vmatprep.subr.mxu0 0.0
    %772 = vmatpush1.msra.mxu0 0.0
    %773 = vmatprep.subr.mxu0 0.0
    %774 = vmatpush1.msra.mxu0 0.0
    %775 = vmatprep.subr.mxu0 0.0
    %776 = vmatpush1.msra.mxu0 0.0
    %777 = vmatprep.subr.mxu0 0.0
    %778 = vmatpush1.msra.mxu0 0.0
    %779 = vmatprep.subr.mxu0 0.0
    %780 = vmatpush1.msra.mxu0 0.0
    %781 = vmatprep.subr.mxu0 0.0
    %782 = vmatpush1.msra.mxu0 0.0
    %783 = vmatprep.subr.mxu0 0.0
    %784 = vmatpush1.msra.mxu0 0.0
    %785 = vmatprep.subr.mxu0 0.0
    %786 = vmatpush1.msra.mxu0 0.0
    %787 = vmatprep.mubr.f32.mxu0 0.0
    %788 = vmatmul.mubr.f32.gmra.mrb[0].mxu0 %v628
    %v789 = vpop.f32.mrb[0].mxu0
    %v790 = vadd.f32 %v60, %v789
    %v791 = vpop.f32.mrb[0].mxu0
    %792 = vmatprep.mubr.f32.mxu0 0.0
    %793 = vmatmul.mubr.f32.gmra.mrb[0].mxu0 %v631
    %v794 = vpop.f32.mrb[0].mxu0
    %v795 = vadd.f32 %v60, %v794
    %v796 = vpop.f32.mrb[0].mxu0
    %797 = vmatprep.mubr.f32.mxu0 0.0
    %798 = vmatmul.mubr.f32.gmra.mrb[0].mxu0 %v634
    %v799 = vpop.f32.mrb[0].mxu0
    %v800 = vadd.f32 %v60, %v799
    %v801 = vpop.f32.mrb[0].mxu0
    %802 = vmatprep.mubr.f32.mxu0 0.0
    %803 = vmatmul.mubr.f32.gmra.mrb[0].mxu0 %v637
    %v804 = vpop.f32.mrb[0].mxu0
    %v805 = vadd.f32 %v60, %v804
    %v806 = vpop.f32.mrb[0].mxu0
    %807 = vmatprep.mubr.f32.mxu0 0.0
    %808 = vmatmul.mubr.f32.gmra.mrb[0].mxu0 %v640
    %v809 = vpop.f32.mrb[0].mxu0
    %v810 = vadd.f32 %v60, %v809
    %v811 = vpop.f32.mrb[0].mxu0
    %812 = vmatprep.mubr.f32.mxu0 0.0
    %813 = vmatmul.mubr.f32.gmra.mrb[0].mxu0 %v643
    %v814 = vpop.f32.mrb[0].mxu0
    %v815 = vadd.f32 %v60, %v814
    %v816 = vpop.f32.mrb[0].mxu0
    %817 = vmatprep.mubr.f32.mxu0 0.0
    %818 = vmatmul.mubr.f32.gmra.mrb[0].mxu0 %v646
    %v819 = vpop.f32.mrb[0].mxu0
    %v820 = vadd.f32 %v60, %v819
    %v821 = vpop.f32.mrb[0].mxu0
    %822 = vmatprep.mubr.f32.mxu0 0.0
    %823 = vmatmul.mubr.f32.gmra.mrb[0].mxu0 %v649
    %v824 = vpop.f32.mrb[0].mxu0
    %v825 = vadd.f32 %v60, %v824
    %v826 = vpop.f32.mrb[0].mxu0
    %827 = vmatprep.mubr.f32.mxu0 0.0
    %828 = vmatmul.mubr.f32.gmra.mrb[0].mxu0 %v652
    %v829 = vpop.f32.mrb[0].mxu0
    %v830 = vadd.f32 %v60, %v829
    %v831 = vpop.f32.mrb[0].mxu0
    %832 = vmatprep.mubr.f32.mxu0 0.0
    %833 = vmatmul.mubr.f32.gmra.mrb[0].mxu0 %v655
    %v834 = vpop.f32.mrb[0].mxu0
    %v835 = vadd.f32 %v60, %v834
    %v836 = vpop.f32.mrb[0].mxu0
    %837 = vmatprep.mubr.f32.mxu0 0.0
    %838 = vmatmul.mubr.f32.gmra.mrb[0].mxu0 %v658
    %v839 = vpop.f32.mrb[0].mxu0
    %v840 = vadd.f32 %v60, %v839
    %v841 = vpop.f32.mrb[0].mxu0
    %842 = vmatprep.mubr.f32.mxu0 0.0
    %843 = vmatmul.mubr.f32.gmra.mrb[0].mxu0 %v661
    %v844 = vpop.f32.mrb[0].mxu0
    %v845 = vadd.f32 %v60, %v844
    %v846 = vpop.f32.mrb[0].mxu0
    %847 = vmatprep.mubr.f32.mxu0 0.0
    %848 = vmatmul.mubr.f32.gmra.mrb[0].mxu0 %v664
    %v849 = vpop.f32.mrb[0].mxu0
    %v850 = vadd.f32 %v60, %v849
    %v851 = vpop.f32.mrb[0].mxu0
    %852 = vmatprep.mubr.f32.mxu0 0.0
    %853 = vmatmul.mubr.f32.gmra.mrb[0].mxu0 %v667
    %v854 = vpop.f32.mrb[0].mxu0
    %v855 = vadd.f32 %v60, %v854
    %v856 = vpop.f32.mrb[0].mxu0
    %857 = vmatprep.mubr.f32.mxu0 0.0
    %858 = vmatmul.mubr.f32.gmra.mrb[0].mxu0 %v670
    %v859 = vpop.f32.mrb[0].mxu0
    %v860 = vadd.f32 %v60, %v859
    %v861 = vpop.f32.mrb[0].mxu0
    %862 = vmatprep.mubr.f32.mxu0 0.0
    %863 = vmatmul.mubr.f32.gmra.mrb[0].mxu0 %v673
    %v864 = vpop.f32.mrb[0].mxu0
    %v865 = vadd.f32 %v60, %v864
    %v866 = vpop.f32.mrb[0].mxu0
    %867 = vmatprep.mubr.f32.mxu0 0.0
    %868 = vmatmul.mubr.f32.gmra.mrb[0].mxu0 %v676
    %v869 = vpop.f32.mrb[0].mxu0
    %v870 = vadd.f32 %v60, %v869
    %v871 = vpop.f32.mrb[0].mxu0
    %872 = vmatprep.mubr.f32.mxu0 0.0
    %873 = vmatmul.mubr.f32.gmra.mrb[0].mxu0 %v679
    %v874 = vpop.f32.mrb[0].mxu0
    %v875 = vadd.f32 %v60, %v874
    %v876 = vpop.f32.mrb[0].mxu0
    %877 = vmatprep.mubr.f32.mxu0 0.0
    %878 = vmatmul.mubr.f32.gmra.mrb[0].mxu0 %v682
    %v879 = vpop.f32.mrb[0].mxu0
    %v880 = vadd.f32 %v60, %v879
    %v881 = vpop.f32.mrb[0].mxu0
    %882 = vmatprep.mubr.f32.mxu0 0.0
    %883 = vmatmul.mubr.f32.gmra.mrb[0].mxu0 %v685
    %v884 = vpop.f32.mrb[0].mxu0
    %v885 = vadd.f32 %v60, %v884
    %v886 = vpop.f32.mrb[0].mxu0
    %887 = vmatprep.mubr.f32.mxu0 0.0
    %888 = vmatmul.mubr.f32.gmra.mrb[0].mxu0 %v688
    %v889 = vpop.f32.mrb[0].mxu0
    %v890 = vadd.f32 %v60, %v889
    %v891 = vpop.f32.mrb[0].mxu0
    %892 = vmatprep.mubr.f32.mxu0 0.0
    %893 = vmatmul.mubr.f32.gmra.mrb[0].mxu0 %v691
    %v894 = vpop.f32.mrb[0].mxu0
    %v895 = vadd.f32 %v60, %v894
    %v896 = vpop.f32.mrb[0].mxu0
    %897 = vmatprep.mubr.f32.mxu0 0.0
    %898 = vmatmul.mubr.f32.gmra.mrb[0].mxu0 %v694
    %v899 = vpop.f32.mrb[0].mxu0
    %v900 = vadd.f32 %v60, %v899
    %v901 = vpop.f32.mrb[0].mxu0
    %902 = vmatprep.mubr.f32.mxu0 0.0
    %903 = vmatmul.mubr.f32.gmra.mrb[0].mxu0 %v697
    %v904 = vpop.f32.mrb[0].mxu0
    %v905 = vadd.f32 %v60, %v904
    %v906 = vpop.f32.mrb[0].mxu0
    %907 = vmatprep.mubr.f32.mxu0 0.0
    %908 = vmatmul.mubr.f32.gmra.mrb[0].mxu0 %v700
    %v909 = vpop.f32.mrb[0].mxu0
    %v910 = vadd.f32 %v60, %v909
    %v911 = vpop.f32.mrb[0].mxu0
    %912 = vmatprep.mubr.f32.mxu0 0.0
    %913 = vmatmul.mubr.f32.gmra.mrb[0].mxu0 %v703
    %v914 = vpop.f32.mrb[0].mxu0
    %v915 = vadd.f32 %v60, %v914
    %v916 = vpop.f32.mrb[0].mxu0
    %917 = vmatprep.mubr.f32.mxu0 0.0
    %918 = vmatmul.mubr.f32.gmra.mrb[0].mxu0 %v706
    %v919 = vpop.f32.mrb[0].mxu0
    %v920 = vadd.f32 %v60, %v919
    %v921 = vpop.f32.mrb[0].mxu0
    %922 = vmatprep.mubr.f32.mxu0 0.0
    %923 = vmatmul.mubr.f32.gmra.mrb[0].mxu0 %v709
    %v924 = vpop.f32.mrb[0].mxu0
    %v925 = vadd.f32 %v60, %v924
    %v926 = vpop.f32.mrb[0].mxu0
    %927 = vmatprep.mubr.f32.mxu0 0.0
    %928 = vmatmul.mubr.f32.gmra.mrb[0].mxu0 %v712
    %v929 = vpop.f32.mrb[0].mxu0
    %v930 = vadd.f32 %v60, %v929
    %v931 = vpop.f32.mrb[0].mxu0
    %932 = vmatprep.mubr.f32.mxu0 0.0
    %933 = vmatmul.mubr.f32.gmra.mrb[0].mxu0 %v715
    %v934 = vpop.f32.mrb[0].mxu0
    %v935 = vadd.f32 %v60, %v934
    %v936 = vpop.f32.mrb[0].mxu0
    %937 = vmatprep.mubr.f32.mxu0 0.0
    %938 = vmatmul.mubr.f32.gmra.mrb[0].mxu0 %v718
    %v939 = vpop.f32.mrb[0].mxu0
    %v940 = vadd.f32 %v60, %v939
    %v941 = vpop.f32.mrb[0].mxu0
    %942 = vmatprep.mubr.f32.mxu0 0.0
    %943 = vmatmul.mubr.f32.gmra.mrb[0].mxu0 %v721
    %v944 = vpop.f32.mrb[0].mxu0
    %v945 = vadd.f32 %v60, %v944
    %v946 = vpop.f32.mrb[0].mxu0
    %947 = vdwg.mxu0
    %v948 = vmax.f32 %v790, 0.0
    %v949 = vmax.f32 %v795, 0.0
    %v950 = vmax.f32 %v800, 0.0
    %v951 = vmax.f32 %v805, 0.0
    %v952 = vmax.f32 %v810, 0.0
    %v953 = vmax.f32 %v815, 0.0
    %v954 = vmax.f32 %v820, 0.0
    %v955 = vmax.f32 %v825, 0.0
    %v956 = vmax.f32 %v830, 0.0
    %v957 = vmax.f32 %v835, 0.0
    %v958 = vmax.f32 %v840, 0.0
    %v959 = vmax.f32 %v845, 0.0
    %v960 = vmax.f32 %v850, 0.0
    %v961 = vmax.f32 %v855, 0.0
    %v962 = vmax.f32 %v860, 0.0
    %v963 = vmax.f32 %v865, 0.0
    %v964 = vmax.f32 %v870, 0.0
    %v965 = vmax.f32 %v875, 0.0
    %v966 = vmax.f32 %v880, 0.0
    %v967 = vmax.f32 %v885, 0.0
    %v968 = vmax.f32 %v890, 0.0
    %v969 = vmax.f32 %v895, 0.0
    %v970 = vmax.f32 %v900, 0.0
    %v971 = vmax.f32 %v905, 0.0
    %v972 = vmax.f32 %v910, 0.0
    %v973 = vmax.f32 %v915, 0.0
    %v974 = vmax.f32 %v920, 0.0
    %v975 = vmax.f32 %v925, 0.0
    %v976 = vmax.f32 %v930, 0.0
    %v977 = vmax.f32 %v935, 0.0
    %v978 = vmax.f32 %v940, 0.0
    %v979 = vmax.f32 %v945, 0.0
    %v980 = vsel %vm486, %v948, 0.0
    %v981 = vsel %vm486, %v949, 0.0
    %v982 = vadd.f32 %v980, %v981
    %v983 = vsel %vm486, %v950, 0.0
    %v984 = vadd.f32 %v982, %v983
    %v985 = vsel %vm486, %v951, 0.0
    %v986 = vadd.f32 %v984, %v985
    %v987 = vsel %vm486, %v952, 0.0
    %v988 = vadd.f32 %v986, %v987
    %v989 = vsel %vm486, %v953, 0.0
    %v990 = vadd.f32 %v988, %v989
    %v991 = vsel %vm486, %v954, 0.0
    %v992 = vadd.f32 %v990, %v991
    %v993 = vsel %vm486, %v955, 0.0
    %v994 = vadd.f32 %v992, %v993
    %v995 = vsel %vm486, %v956, 0.0
    %v996 = vadd.f32 %v994, %v995
    %v997 = vsel %vm486, %v957, 0.0
    %v998 = vadd.f32 %v996, %v997
    %v999 = vsel %vm486, %v958, 0.0
    %v1000 = vadd.f32 %v998, %v999
    %v1001 = vsel %vm486, %v959, 0.0
    %v1002 = vadd.f32 %v1000, %v1001
    %v1003 = vsel %vm486, %v960, 0.0
    %v1004 = vadd.f32 %v1002, %v1003
    %v1005 = vsel %vm486, %v961, 0.0
    %v1006 = vadd.f32 %v1004, %v1005
    %v1007 = vsel %vm486, %v962, 0.0
    %v1008 = vadd.f32 %v1006, %v1007
    %v1009 = vsel %vm486, %v963, 0.0
    %v1010 = vadd.f32 %v1008, %v1009
    %v1011 = vsel %vm486, %v964, 0.0
    %v1012 = vadd.f32 %v1010, %v1011
    %v1013 = vsel %vm486, %v965, 0.0
    %v1014 = vadd.f32 %v1012, %v1013
    %v1015 = vsel %vm486, %v966, 0.0
    %v1016 = vadd.f32 %v1014, %v1015
    %v1017 = vsel %vm486, %v967, 0.0
    %v1018 = vadd.f32 %v1016, %v1017
    %v1019 = vsel %vm486, %v968, 0.0
    %v1020 = vadd.f32 %v1018, %v1019
    %v1021 = vsel %vm486, %v969, 0.0
    %v1022 = vadd.f32 %v1020, %v1021
    %v1023 = vsel %vm486, %v970, 0.0
    %v1024 = vadd.f32 %v1022, %v1023
    %v1025 = vsel %vm486, %v971, 0.0
    %v1026 = vadd.f32 %v1024, %v1025
    %v1027 = vsel %vm486, %v972, 0.0
    %v1028 = vadd.f32 %v1026, %v1027
    %v1029 = vsel %vm486, %v973, 0.0
    %v1030 = vadd.f32 %v1028, %v1029
    %v1031 = vsel %vm486, %v974, 0.0
    %v1032 = vadd.f32 %v1030, %v1031
    %v1033 = vsel %vm486, %v975, 0.0
    %v1034 = vadd.f32 %v1032, %v1033
    %v1035 = vsel %vm486, %v976, 0.0
    %v1036 = vadd.f32 %v1034, %v1035
    %v1037 = vsel %vm486, %v977, 0.0
    %v1038 = vadd.f32 %v1036, %v1037
    %v1039 = vsel %vm486, %v978, 0.0
    %v1040 = vadd.f32 %v1038, %v1039
    %v1041 = vsel %vm486, %v979, 0.0
    %v1042 = vadd.f32 %v1040, %v1041
    %v1043 = vrot.slane %v1042, 4
    %v1044 = vadd.f32 %v1042, %v1043
    %v1045 = vrot.slane %v1044, 2
    %v1046 = vadd.f32 %v1044, %v1045
    %v1047 = vrot.slane %v1046, 1
    %v1048 = vadd.f32 %v1046, %v1047
    %v1049 = vmul.f32 %v1048, %v556
    %vm1050 = vcmask 1040384
    %v1051 = vsel %vm1050, %v557, %v1049
    %v1052 = vld [vmem:[#allocation7] sm:$0xff]
    %v1053 = vld [vmem:[#allocation7 + $0x8] sm:$0xff]
    %v1054 = vld [vmem:[#allocation7 + $0x10] sm:$0xff]
    %v1055 = vld [vmem:[#allocation7 + $0x18] sm:$0xff]
    %v1056 = vld [vmem:[#allocation7 + $0x20] sm:$0x1]
    %v1057 = vlaneseq
    %v1058 = vshrl.u32 %v1057, 7
    %v1059 = vsub.s32 0, %v1058
    %v1060 = vrot.slane %v1056, %v1059
    %v1062 = vsel %vm486, %v1051, 0
    %1064 = vmatprep.subr.mxu0 0.0
    %1065 = vmatpush1.msra.mxu0 %v1052
    %1066 = vmatprep.subr.mxu0 0.0
    %1067 = vmatpush1.msra.mxu0 %v1053
    %1068 = vmatprep.subr.mxu0 0.0
    %1069 = vmatpush1.msra.mxu0 %v1054
    %1070 = vmatprep.subr.mxu0 0.0
    %1071 = vmatpush1.msra.mxu0 %v1055
    %1072 = vmatprep.subr.mxu0 0.0
    %1073 = vmatpush1.msra.mxu0 0.0
    %1074 = vmatprep.subr.mxu0 0.0
    %1075 = vmatpush1.msra.mxu0 0.0
    %1076 = vmatprep.subr.mxu0 0.0
    %1077 = vmatpush1.msra.mxu0 0.0
    %1078 = vmatprep.subr.mxu0 0.0
    %1079 = vmatpush1.msra.mxu0 0.0
    %1080 = vmatprep.subr.mxu0 0.0
    %1081 = vmatpush1.msra.mxu0 0.0
    %1082 = vmatprep.subr.mxu0 0.0
    %1083 = vmatpush1.msra.mxu0 0.0
    %1084 = vmatprep.subr.mxu0 0.0
    %1085 = vmatpush1.msra.mxu0 0.0
    %1086 = vmatprep.subr.mxu0 0.0
    %1087 = vmatpush1.msra.mxu0 0.0
    %1088 = vmatprep.subr.mxu0 0.0
    %1089 = vmatpush1.msra.mxu0 0.0
    %1090 = vmatprep.subr.mxu0 0.0
    %1091 = vmatpush1.msra.mxu0 0.0
    %1092 = vmatprep.subr.mxu0 0.0
    %1093 = vmatpush1.msra.mxu0 0.0
    %1094 = vmatprep.subr.mxu0 0.0
    %1095 = vmatpush1.msra.mxu0 0.0
    %1096 = vmatprep.subr.mxu0 0.0
    %1097 = vmatpush1.msra.mxu0 0.0
    %1098 = vmatprep.subr.mxu0 0.0
    %1099 = vmatpush1.msra.mxu0 0.0
    %1100 = vmatprep.subr.mxu0 0.0
    %1101 = vmatpush1.msra.mxu0 0.0
    %1102 = vmatprep.subr.mxu0 0.0
    %1103 = vmatpush1.msra.mxu0 0.0
    %1104 = vmatprep.subr.mxu0 0.0
    %1105 = vmatpush1.msra.mxu0 0.0
    %1106 = vmatprep.subr.mxu0 0.0
    %1107 = vmatpush1.msra.mxu0 0.0
    %1108 = vmatprep.subr.mxu0 0.0
    %1109 = vmatpush1.msra.mxu0 0.0
    %1110 = vmatprep.subr.mxu0 0.0
    %1111 = vmatpush1.msra.mxu0 0.0
    %1112 = vmatprep.subr.mxu0 0.0
    %1113 = vmatpush1.msra.mxu0 0.0
    %1114 = vmatprep.subr.mxu0 0.0
    %1115 = vmatpush1.msra.mxu0 0.0
    %1116 = vmatprep.subr.mxu0 0.0
    %1117 = vmatpush1.msra.mxu0 0.0
    %1118 = vmatprep.subr.mxu0 0.0
    %1119 = vmatpush1.msra.mxu0 0.0
    %1120 = vmatprep.subr.mxu0 0.0
    %1121 = vmatpush1.msra.mxu0 0.0
    %1122 = vmatprep.subr.mxu0 0.0
    %1123 = vmatpush1.msra.mxu0 0.0
    %1124 = vmatprep.subr.mxu0 0.0
    %1125 = vmatpush1.msra.mxu0 0.0
    %1126 = vmatprep.subr.mxu0 0.0
    %1127 = vmatpush1.msra.mxu0 0.0
    %1128 = vmatprep.mubr.f32.mxu0 0.0
    %1129 = vmatmul.mubr.f32.gmra.mrb[0].mxu0 %v1062
    %v1130 = vpop.f32.mrb[0].mxu0
    %v1131 = vadd.f32 %v1060, %v1130
    %v1132 = vpop.f32.mrb[0].mxu0
    %1133 = vdwg.mxu0
    %v1134 = vsub.f32 0.0, %v1131
    %v1135 = vmul.f32 %v1134, 1.442695
    %v1136 = vpow.pop %v1135
    %v1137 = vadd.f32 %v1136, 1.0
    %v1138 = vrcp.pop %v1137
    %v1139 = vlaneseq
    %v1140 = vand.u32 %v1139, 127
    %vm1141 = vcmp.eq.s32.totalorder %v1140, 0
    %1143 = vset.pattern.permute.xlu0 0
    %1144 = vperm.xlu0 %1143, %v1138
    %v1145 = vpop.permute.xlu0 %1144
    %v1147 = vmul.f32 %v1145, %v1131
    %v1148 = vsel %vm1141, %v1145, %v1147
    %1149 = vst [vmem:[#allocation8] sm:$0x3] %v1148
    // Predicated region
    $region26: #{tpu_custom_call.1} parent=1 // pred_check
      _
    $region27: #{tpu_custom_call.1} parent=1 // pred_check_branch
      %1151 = sbr.rel (0) target = $region29
    $region28: #{tpu_custom_call.1} parent=1 // pred_region
      %s1153 = ssub.s32 32, 32
      %1154 = vsyncadd [#allocation4], %s1153
      %s1156 = sshll.u32 [#allocation8], 4
      %s1157 = int_to_ptr.vmem [resolvable:$true] %s1156
      %1159 = dma.vmem_to_hbm [thread:$0]  %s1157, 32, %s3, [#allocation4]
    $region29: #{tpu_custom_call.1} parent=1 // pred_fallthru
      _
    // Predicated region
    $region30: #{tpu_custom_call.1} parent=1 // pred_check
      _
    $region31: #{tpu_custom_call.1} parent=1 // pred_check_branch
      %1161 = sbr.rel (0) target = $region33
    $region32: #{tpu_custom_call.1} parent=1 // pred_region
      %1162 = dma.done [#allocation4], 32
    $region33: #{tpu_custom_call.1} parent=1 // pred_fallthru
      _
    %1163 = vsyncpa [#allocation3], 1
    %1164 = vsyncpa [#allocation6], 1
    %1165 = vsyncpa [#allocation4], 1

</llo_original>
